<compile_context>
chip_gen: v6e
topology: v6e:2x2x1
jax: 0.10.0
libtpu: 0.0.40
codegen_flags: <defaults>
</compile_context>

<pallas_src>
import jax
import jax.numpy as jnp
from jax import lax
from jax.experimental import pallas as pl
from jax.experimental.pallas import tpu as pltpu


def _round_up(x, m):
    return (x + m - 1) // m * m


def _sublane_pack(dtype):
    # f32 -> 8, bf16 -> 16, int8/fp8 -> 32 (sub-32-bit dtypes pack along sublanes).
    itemsize = jnp.dtype(dtype).itemsize
    return max(8, 32 // max(1, itemsize))


def _device_config():
    """Generation-aware tile caps + VMEM budget."""
    gen = "unknown"
    try:
        kind = jax.devices()[0].device_kind.lower()
        if "v7" in kind:
            gen = "v7"
        elif "v6" in kind:
            gen = "v6"
        elif "v5" in kind:
            gen = "v5"
    except Exception:
        pass
    if gen == "v6":
        # 128 MiB physical VMEM, ~650 FLOP/byte bf16 crossover: go big.
        return dict(tm_cap=512, tn_cap=1024, tk_cap=1024,
                    vmem=96 * 1024 * 1024, two_blocks=False)
    if gen == "v7":
        # Only 64 MiB physical VMEM per TC; cap footprint, keep both TCs busy.
        return dict(tm_cap=512, tn_cap=512, tk_cap=1024,
                    vmem=40 * 1024 * 1024, two_blocks=True)
    if gen == "v5":
        # tk-heavy: amortize the f32 accumulator RMW (single vst slot).
        return dict(tm_cap=256, tn_cap=512, tk_cap=2048,
                    vmem=64 * 1024 * 1024, two_blocks=False)
    # Conservative default that fits every generation's physical VMEM.
    return dict(tm_cap=512, tn_cap=512, tk_cap=1024,
                vmem=40 * 1024 * 1024, two_blocks=True)


def _pick_tile(dim, cap, align):
    """Tile size <= cap, multiple of `align`; prefer one that exactly divides
    the aligned dim so no wrapper-side padding is needed."""
    d = _round_up(dim, align)
    if d <= cap:
        return d
    best = align
    t = (cap // align) * align
    while t >= align:
        if d % t == 0:
            best = t
            break
        t -= align
    if best >= cap // 2:
        return best
    return (cap // align) * align  # accept padding rather than a tiny tile


# ---------------------------------------------------------------------------
# Kernels
# ---------------------------------------------------------------------------

def _linear_single_kernel(x_ref, w_ref, b_ref, o_ref):
    # x_ref: (M, K), w_ref: (N, K), b_ref: (1, N), o_ref: (M, N)
    acc = lax.dot_general(
        x_ref[...],
        w_ref[...],
        dimension_numbers=(((1,), (1,)), ((), ())),  # x @ w.T on the MXU
        preferred_element_type=jnp.float32,
    )
    o_ref[...] = (acc + b_ref[...].astype(jnp.float32)).astype(o_ref.dtype)


def _linear_tiled_kernel(x_ref, w_ref, b_ref, o_ref, acc_ref):
    # x_ref: (tm, tk), w_ref: (tn, tk), b_ref: (1, tn), o_ref: (tm, tn)
    k = pl.program_id(2)

    @pl.when(k == 0)
    def _():
        # Fold the bias into the accumulator init (no finalize add needed).
        acc_ref[...] = jnp.broadcast_to(
            b_ref[...].astype(jnp.float32), acc_ref.shape
        )

    acc_ref[...] += lax.dot_general(
        x_ref[...],
        w_ref[...],
        dimension_numbers=(((1,), (1,)), ((), ())),  # contract last dims (NT)
        preferred_element_type=jnp.float32,
    )

    @pl.when(k == pl.num_programs(2) - 1)
    def _():
        o_ref[...] = acc_ref[...].astype(o_ref.dtype)


# ---------------------------------------------------------------------------
# Wrapper
# ---------------------------------------------------------------------------

def simple_rsz_forward(x, weight, bias):
    """x: (..., inp_channel); weight: (oup_channel, inp_channel); bias: (oup_channel,)."""
    inp_channel = weight.shape[1]
    oup_channel = weight.shape[0]
    assert x.shape[-1] == inp_channel

    lead_shape = x.shape[:-1]
    m = 1
    for d in lead_shape:
        m *= d

    x2d = x.reshape(m, inp_channel)
    b2d = bias.reshape(1, oup_channel)

    dtype_bytes = jnp.dtype(x.dtype).itemsize
    w_bytes = jnp.dtype(weight.dtype).itemsize
    cost = pl.CostEstimate(
        flops=2 * m * inp_channel * oup_channel,
        transcendentals=0,
        bytes_accessed=(
            m * inp_channel * dtype_bytes
            + oup_channel * inp_channel * w_bytes
            + oup_channel * jnp.dtype(bias.dtype).itemsize
            + m * oup_channel * dtype_bytes
        ),
    )

    cfg = _device_config()

    # ---- Small-shape fast path: single block, no padding, no grid ----------
    footprint = (
        m * inp_channel * dtype_bytes
        + oup_channel * inp_channel * w_bytes
        + oup_channel * w_bytes
        + m * oup_channel * dtype_bytes
        + m * oup_channel * 4  # f32 intermediate
    )
    if (m <= 1024 and oup_channel <= 2048 and inp_channel <= 2048
            and footprint <= 16 * 1024 * 1024):
        out2d = pl.pallas_call(
            _linear_single_kernel,
            out_shape=jax.ShapeDtypeStruct((m, oup_channel), x.dtype),
            in_specs=[
                pl.BlockSpec(memory_space=pltpu.MemorySpace.VMEM),
                pl.BlockSpec(memory_space=pltpu.MemorySpace.VMEM),
                pl.BlockSpec(memory_space=pltpu.MemorySpace.VMEM),
            ],
            out_specs=pl.BlockSpec(memory_space=pltpu.MemorySpace.VMEM),
            compiler_params=pltpu.CompilerParams(
                vmem_limit_bytes=cfg["vmem"],
            ),
            cost_estimate=cost,
        )(x2d, weight, b2d)
        return out2d.reshape(*lead_shape, oup_channel)

    # ---- Tiled path ---------------------------------------------------------
    pack = _sublane_pack(x.dtype)
    tm = _pick_tile(m, cfg["tm_cap"], pack)
    tn = _pick_tile(oup_channel, cfg["tn_cap"], 128)
    tk = _pick_tile(inp_channel, cfg["tk_cap"], 128)

    m_pad = _round_up(m, tm)
    n_pad = _round_up(oup_channel, tn)
    k_pad = _round_up(inp_channel, tk)

    # v7x megacore: make sure at least 2 blocks exist along a parallel axis.
    if cfg["two_blocks"]:
        while (m_pad // tm) * (n_pad // tn) < 2:
            if tn > 128:
                tn = max(128, (tn // 2 // 128) * 128)
                n_pad = _round_up(oup_channel, tn)
            elif tm > pack:
                tm = max(pack, _round_up(tm // 2, pack))
                m_pad = _round_up(m, tm)
            else:
                break

    # Zero-pad only when a dim is not already a tile multiple (the tile picker
    # avoids this whenever the lane-aligned dim has a suitable divisor).
    if (m_pad, k_pad) != (m, inp_channel):
        x2d = jnp.pad(x2d, ((0, m_pad - m), (0, k_pad - inp_channel)))
    w2d = weight  # native (N, K) layout — no HBM transpose pass
    if (n_pad, k_pad) != (oup_channel, inp_channel):
        w2d = jnp.pad(w2d, ((0, n_pad - oup_channel), (0, k_pad - inp_channel)))
    if n_pad != oup_channel:
        b2d = jnp.pad(b2d, ((0, 0), (0, n_pad - oup_channel)))

    grid = (m_pad // tm, n_pad // tn, k_pad // tk)

    out2d = pl.pallas_call(
        _linear_tiled_kernel,
        out_shape=jax.ShapeDtypeStruct((m_pad, n_pad), x.dtype),
        grid_spec=pltpu.PrefetchScalarGridSpec(
            num_scalar_prefetch=0,
            grid=grid,
            in_specs=[
                pl.BlockSpec((tm, tk), lambda i, j, k: (i, k)),   # x tile
                pl.BlockSpec((tn, tk), lambda i, j, k: (j, k)),   # weight (N,K) tile
                pl.BlockSpec((1, tn), lambda i, j, k: (0, j)),    # bias tile
            ],
            out_specs=pl.BlockSpec((tm, tn), lambda i, j, k: (i, j)),
            scratch_shapes=[pltpu.VMEM((tm, tn), jnp.float32)],
        ),
        compiler_params=pltpu.CompilerParams(
            dimension_semantics=("parallel", "parallel", "arbitrary"),
            vmem_limit_bytes=cfg["vmem"],
        ),
        cost_estimate=cost,
    )(x2d, w2d, b2d)

    if (m_pad, n_pad) != (m, oup_channel):
        out2d = out2d[:m, :oup_channel]
    return out2d.reshape(*lead_shape, oup_channel)


if __name__ == "__main__":
    # Module config (small shapes consistent with the forward: linear over last dim).
    inp_channel = 32
    oup_channel = 64
    batch, seq = 2, 8

    key = jax.random.PRNGKey(0)
    k_x, k_w, k_b = jax.random.split(key, 3)

    # Deterministic parameter init (shapes per nn.Linear(inp_channel, oup_channel)).
    bound = 1.0 / jnp.sqrt(inp_channel)
    weight = jax.random.uniform(
        k_w, (oup_channel, inp_channel), jnp.float32, -bound, bound
    )
    bias = jax.random.uniform(k_b, (oup_channel,), jnp.float32, -bound, bound)

    x = jax.random.normal(k_x, (batch, seq, inp_channel), jnp.float32)

    out = simple_rsz_forward(x, weight, bias)
    out = jax.block_until_ready(out)

    # Reference check in plain JAX.
    ref = x @ weight.T + bias
    assert out.shape == (batch, seq, oup_channel)
    assert jnp.allclose(out, ref, atol=1e-5, rtol=1e-5)

    print("KERNEL_OK")
</pallas_src>

<mosaic_0001>
module attributes {stable_mosaic.version = 11 : i64} {
  func.func @_linear_single_kernel(%arg0: memref<16x32xf32, #tpu.memory_space<vmem>>, %arg1: memref<64x32xf32, #tpu.memory_space<vmem>>, %arg2: memref<1x64xf32, #tpu.memory_space<vmem>>, %arg3: memref<16x64xf32, #tpu.memory_space<vmem>>) attributes {dimension_semantics = [], scalar_prefetch = 0 : i64, scratch_operands = 0 : i64, tpu.core_type = #tpu.core_type<tc>} {
    %c0 = arith.constant 0 : index
    %c0_0 = arith.constant 0 : index
    %0 = vector.load %arg0[%c0, %c0_0] : memref<16x32xf32, #tpu.memory_space<vmem>>, vector<16x32xf32>
    %c0_1 = arith.constant 0 : index
    %c0_2 = arith.constant 0 : index
    %1 = vector.load %arg1[%c0_1, %c0_2] : memref<64x32xf32, #tpu.memory_space<vmem>>, vector<64x32xf32>
    %cst = arith.constant dense<0.000000e+00> : vector<16x64xf32>
    %2 = tpu.matmul %0, %1, %cst {dimension_numbers = #tpu.dot_dimension_numbers<[1], [1], [0], [0], [0, 0, 1, 0], [], []>} : vector<16x32xf32>, vector<64x32xf32>, vector<16x64xf32> -> vector<16x64xf32>
    %c0_3 = arith.constant 0 : index
    %c0_4 = arith.constant 0 : index
    %3 = vector.load %arg2[%c0_3, %c0_4] : memref<1x64xf32, #tpu.memory_space<vmem>>, vector<1x64xf32>
    %4 = vector.broadcast %3 : vector<1x64xf32> to vector<16x64xf32>
    %5 = arith.addf %2, %4 : vector<16x64xf32>
    %c0_5 = arith.constant 0 : index
    %c0_6 = arith.constant 0 : index
    %6 = vector.load %arg3[%c0_5, %c0_6] : memref<16x64xf32, #tpu.memory_space<vmem>>, vector<16x64xf32>
    tpu.vector_store %arg3[%c0_5, %c0_6], %5 {strides = array<i32>} : memref<16x64xf32, #tpu.memory_space<vmem>>, vector<16x64xf32>,
    return
  }
}

</mosaic_0001>

<llo_original>
// kernel: tpu_custom_call.1
$region0: #{tpu_custom_call.1}
  #allocation0 [shape = 'u32[]', space=smem, size = 0x4, offset = 0x4, fixed_abs, tag = 'smem constant byte address 0x4 - core index']
  #allocation1 [shape = 'u32[144,128]{1,0:T(1,128)}', space=vmem, size = 0x12000, scoped, tag = 'internal scratch']
  %s0 = inlined_call_operand.vmem [shape: f32[16,32], index: 0, kind: input, shape index: {}]
  %s1 = inlined_call_operand.vmem [shape: f32[64,32], index: 1, kind: input, shape index: {}]
  %s2 = inlined_call_operand.vmem [shape: f32[1,64], index: 2, kind: input, shape index: {}]
  %s3 = inlined_call_operand.hbm [shape: f32[16,64], index: 3, kind: output, shape index: {}]
  %s4 = sld [smem:[#allocation0]]
  $region22: #{tpu_custom_call.1} parent=0
    _
  %s6 = ssub.s32 1, %s4
  %s7 = scalar_select 0, %s6, %s4
  $region1: #{tpu_custom_call.1} parent=0
    #allocation2 [shape = 'u8[8192]{0}', space=vmem, size = 0x2000, scoped, tag = 'output window, operand 0, single buffered']
    #allocation3 [shape = 's32[1]{0}', space=sflag, size = 0x4, scoped, tag = 'scoped memory for tpu_custom_call.1']
    %8 = vsyncpa [#allocation3], 0
    // Predicated region
    $region2: #{tpu_custom_call.1} parent=1 // pred_check
      _
    $region3: #{tpu_custom_call.1} parent=1 // pred_check_branch
      %10 = sbr.rel (0) target = $region5
    $region4: #{tpu_custom_call.1} parent=1 // pred_region
      _
    $region5: #{tpu_custom_call.1} parent=1 // pred_fallthru
      _
    // Predicated region
    $region6: #{tpu_custom_call.1} parent=1 // pred_check
      _
    $region7: #{tpu_custom_call.1} parent=1 // pred_check_branch
      %12 = sbr.rel (0) target = $region9
    $region8: #{tpu_custom_call.1} parent=1 // pred_region
      _
    $region9: #{tpu_custom_call.1} parent=1 // pred_fallthru
      _
    // Predicated region
    $region10: #{tpu_custom_call.1} parent=1 // pred_check
      _
    $region11: #{tpu_custom_call.1} parent=1 // pred_check_branch
      %14 = sbr.rel (0) target = $region13
    $region12: #{tpu_custom_call.1} parent=1 // pred_region
      _
    $region13: #{tpu_custom_call.1} parent=1 // pred_fallthru
      _
    %v15 = vld [vmem:[%s0] sm:$0xff]
    %v16 = vld [vmem:[%s0 + $0x8] sm:$0xff]
    %v17 = vld [vmem:[%s1] sm:$0xff]
    %v18 = vld [vmem:[%s1 + $0x8] sm:$0xff]
    %v19 = vld [vmem:[%s1 + $0x10] sm:$0xff]
    %v20 = vld [vmem:[%s1 + $0x18] sm:$0xff]
    %v21 = vld [vmem:[%s1 + $0x20] sm:$0xff]
    %v22 = vld [vmem:[%s1 + $0x28] sm:$0xff]
    %v23 = vld [vmem:[%s1 + $0x30] sm:$0xff]
    %v24 = vld [vmem:[%s1 + $0x38] sm:$0xff]
    %v25 = vld [vmem:[%s2] sm:$0x1]
    %v27 = vlaneseq
    %v28 = vshrl.u32 %v27, 7
    %v29 = vsub.s32 0, %v28
    %v30 = vrot.slane %v25, %v29
    %vm32 = vcmask 261120
    %v34 = vsel %vm32, %v15, 0
    %v37 = vsel %vm32, %v16, 0
    %v40 = vsel %vm32, %v17, 0
    %v43 = vsel %vm32, %v18, 0
    %v46 = vsel %vm32, %v19, 0
    %v49 = vsel %vm32, %v20, 0
    %v52 = vsel %vm32, %v21, 0
    %v55 = vsel %vm32, %v22, 0
    %v58 = vsel %vm32, %v23, 0
    %v61 = vsel %vm32, %v24, 0
    %63 = vmatprep.subr.mxu0 0.0
    %64 = vmatpush1.xpose.msra.mxu0 0.0
    %65 = vmatprep.subr.mxu0 0.0
    %66 = vmatpush1.xpose.msra.mxu0 0.0
    %67 = vmatprep.subr.mxu0 0.0
    %68 = vmatpush1.xpose.msra.mxu0 0.0
    %69 = vmatprep.subr.mxu0 0.0
    %70 = vmatpush1.xpose.msra.mxu0 0.0
    %71 = vmatprep.subr.mxu0 0.0
    %72 = vmatpush1.xpose.msra.mxu0 0.0
    %73 = vmatprep.subr.mxu0 0.0
    %74 = vmatpush1.xpose.msra.mxu0 0.0
    %75 = vmatprep.subr.mxu0 0.0
    %76 = vmatpush1.xpose.msra.mxu0 0.0
    %77 = vmatprep.subr.mxu0 0.0
    %78 = vmatpush1.xpose.msra.mxu0 0.0
    %79 = vmatprep.subr.mxu0 0.0
    %80 = vmatpush1.xpose.msra.mxu0 %v61
    %81 = vmatprep.subr.mxu0 0.0
    %82 = vmatpush1.xpose.msra.mxu0 %v58
    %83 = vmatprep.subr.mxu0 0.0
    %84 = vmatpush1.xpose.msra.mxu0 %v55
    %85 = vmatprep.subr.mxu0 0.0
    %86 = vmatpush1.xpose.msra.mxu0 %v52
    %87 = vmatprep.subr.mxu0 0.0
    %88 = vmatpush1.xpose.msra.mxu0 %v49
    %89 = vmatprep.subr.mxu0 0.0
    %90 = vmatpush1.xpose.msra.mxu0 %v46
    %91 = vmatprep.subr.mxu0 0.0
    %92 = vmatpush1.xpose.msra.mxu0 %v43
    %93 = vmatprep.subr.mxu0 0.0
    %94 = vmatpush1.xpose.msra.mxu0 %v40
    %95 = vmatprep.subr.mxu0 0.0
    %96 = vmatpush2.xpose.msra.mxu0 0.0
    %97 = vmatprep.subr.mxu0 0.0
    %98 = vmatpush2.xpose.msra.mxu0 0.0
    %99 = vmatprep.subr.mxu0 0.0
    %100 = vmatpush2.xpose.msra.mxu0 0.0
    %101 = vmatprep.subr.mxu0 0.0
    %102 = vmatpush2.xpose.msra.mxu0 0.0
    %103 = vmatprep.subr.mxu0 0.0
    %104 = vmatpush2.xpose.msra.mxu0 0.0
    %105 = vmatprep.subr.mxu0 0.0
    %106 = vmatpush2.xpose.msra.mxu0 0.0
    %107 = vmatprep.subr.mxu0 0.0
    %108 = vmatpush2.xpose.msra.mxu0 0.0
    %109 = vmatprep.subr.mxu0 0.0
    %110 = vmatpush2.xpose.msra.mxu0 0.0
    %111 = vmatprep.subr.mxu0 0.0
    %112 = vmatpush2.xpose.msra.mxu0 0.0
    %113 = vmatprep.subr.mxu0 0.0
    %114 = vmatpush2.xpose.msra.mxu0 0.0
    %115 = vmatprep.subr.mxu0 0.0
    %116 = vmatpush2.xpose.msra.mxu0 0.0
    %117 = vmatprep.subr.mxu0 0.0
    %118 = vmatpush2.xpose.msra.mxu0 0.0
    %119 = vmatprep.subr.mxu0 0.0
    %120 = vmatpush2.xpose.msra.mxu0 0.0
    %121 = vmatprep.subr.mxu0 0.0
    %122 = vmatpush2.xpose.msra.mxu0 0.0
    %123 = vmatprep.subr.mxu0 0.0
    %124 = vmatpush2.xpose.msra.mxu0 0.0
    %125 = vmatprep.subr.mxu0 0.0
    %126 = vmatpush2.xpose.msra.mxu0 0.0
    %127 = vmatprep.mubr.f32.mxu0 0.0
    %128 = vmatmul.mubr.f32.gmra.mxu0 %v34
    %v129 = vpop.f32.mrf.mxu0
    %v130 = vadd.f32 %v30, %v129
    %v131 = vpop.f32.mrf.mxu0
    %132 = vmatprep.mubr.f32.mxu0 0.0
    %133 = vmatmul.mubr.f32.gmra.mxu0 %v37
    %v134 = vpop.f32.mrf.mxu0
    %v135 = vadd.f32 %v30, %v134
    %v136 = vpop.f32.mrf.mxu0
    %137 = vdwg.mxu0
    %vm138 = vcmask 523264
    %139 = vst.msk [vmem:[#allocation2] sm:$0xff] %vm138, %v130
    %140 = vst.msk [vmem:[#allocation2 + $0x8] sm:$0xff] %vm138, %v135
    // Predicated region
    $region14: #{tpu_custom_call.1} parent=1 // pred_check
      _
    $region15: #{tpu_custom_call.1} parent=1 // pred_check_branch
      %142 = sbr.rel (0) target = $region17
    $region16: #{tpu_custom_call.1} parent=1 // pred_region
      %s144 = ssub.s32 256, 256
      %145 = vsyncadd [#allocation3], %s144
      %s146 = sshll.u32 [#allocation2], 4
      %s147 = int_to_ptr.vmem [resolvable:$true] %s146
      %152 = dma.vmem_to_hbm [thread:$0]  %s147, 256, %s3, [#allocation3], 128, 128, 8
    $region17: #{tpu_custom_call.1} parent=1 // pred_fallthru
      _
    // Predicated region
    $region18: #{tpu_custom_call.1} parent=1 // pred_check
      _
    $region19: #{tpu_custom_call.1} parent=1 // pred_check_branch
      %154 = sbr.rel (0) target = $region21
    $region20: #{tpu_custom_call.1} parent=1 // pred_region
      %155 = dma.done [#allocation3], 256
    $region21: #{tpu_custom_call.1} parent=1 // pred_fallthru
      _
    %156 = vsyncpa [#allocation3], 1

</llo_original>
